<compile_context>
chip_gen: v5e
topology: v5e:2x2
jax: 0.10.0
libtpu: 0.0.40
codegen_flags: <defaults>
</compile_context>

<pallas_src>
import jax
import jax.numpy as jnp
from jax.experimental import pallas as pl
from jax.experimental.pallas import tpu as pltpu


def _round_up(x, m):
    return (x + m - 1) // m * m


def _spdconv_kernel(zT_ref, wT_ref, b_ref, o_ref):
    # zT_ref: (Kp, TM)  bf16 space-to-depth'd activations (K on sublanes)
    # wT_ref: (Co, Kp)  bf16 BN-folded 1x1 conv weight   (resident across grid)
    # b_ref : (Co, 1)   f32  BN-folded bias              (resident across grid)
    # o_ref : (Co, TM)  output tile (lane-dense store, no vst.msk on narrow Co)
    y = jnp.dot(wT_ref[...], zT_ref[...], preferred_element_type=jnp.float32)
    y = y + b_ref[...]                                    # lane-broadcast bias
    o_ref[...] = (y * jax.nn.sigmoid(y)).astype(o_ref.dtype)   # SiLU


def _choose_tm(M, Kp, Co, out_itemsize, tm_requested):
    # Bytes per output column that end up double-buffered in VMEM
    # (bf16 activation block in + out_dtype block out).
    bytes_per_col = 2 * (2 * Kp + out_itemsize * Co)
    vmem_budget = 48 * 1024 * 1024          # conservative: v7x has 64 MiB / TC
    tm_cap = max(128, (vmem_budget // bytes_per_col) // 128 * 128)
    tm = min(tm_requested, tm_cap)
    tm = min(tm, _round_up(M, 128))                  # don't tile past the data
    if M > 128:
        # Keep >= 2 tiles so ("parallel",) can shard across v7x's two cores.
        tm = min(tm, max(128, _round_up(pl.cdiv(M, 2), 128)))
    return max(128, _round_up(tm, 128))


def spdconv_forward(x, conv_weight, bn_gamma, bn_beta, bn_mean, bn_var,
                    eps=1e-3, tm=65536, out_dtype=jnp.float32,
                    channel_major_out=False):
    """SPDConv forward: space-to-depth(2) -> 1x1 conv (no bias) -> BN -> SiLU.

    x           : (N, C, H, W), NCHW, H and W even.
    conv_weight : (Co, 4*C) 1x1 conv weight in the PyTorch concat order.
    Returns (N, Co, H//2, W//2) NCHW; with channel_major_out=True, returns the
    kernel-native (Co, N, H//2, W//2) layout (no extra HBM transpose pass).
    Note: eps default follows YOLO-style Conv blocks (1e-3); plain
    nn.BatchNorm2d default is 1e-5 -- pass eps=1e-5 for that case.
    """
    N, C, H, W = x.shape
    assert H % 2 == 0 and W % 2 == 0
    Ho, Wo = H // 2, W // 2
    Co, K = conv_weight.shape
    assert K == 4 * C
    M = N * Ho * Wo
    out_dtype = jnp.dtype(out_dtype)

    # --- pad channels so K is a multiple of 16 (bf16 sublane packing) -------
    Cp = _round_up(C, 4)
    Kp = 4 * Cp
    if Cp != C:
        x = jnp.pad(x, ((0, 0), (0, Cp - C), (0, 0), (0, 0)))

    # --- space-to-depth as ONE transpose(+convert), K-major layout ----------
    # zT[k, m] = x[n, c, 2*ho+dh, 2*wo+dw],  k = dh*2Cp + dw*Cp + c,
    #                                        m = n*Ho*Wo + ho*Wo + wo
    zT = (x.reshape(N, Cp, Ho, 2, Wo, 2)        # (n, c, ho, dh, wo, dw)
            .transpose(3, 5, 1, 0, 2, 4)        # (dh, dw, c, n, ho, wo)
            .reshape(Kp, M)
            .astype(jnp.bfloat16))

    # --- permute/pad weight columns to match the (dh, dw, c) ordering -------
    # PyTorch concat order is q = dh + 2*dw, i.e. conv_weight is (Co,dw,dh,c).
    w = conv_weight.reshape(Co, 2, 2, C).transpose(0, 2, 1, 3)   # (Co,dh,dw,c)
    if Cp != C:
        w = jnp.pad(w, ((0, 0), (0, 0), (0, 0), (0, Cp - C)))
    w = w.reshape(Co, Kp)

    # --- fold BatchNorm (inference, running stats) into the 1x1 conv --------
    inv_std = 1.0 / jnp.sqrt(bn_var.astype(jnp.float32) + eps)        # (Co,)
    scale = bn_gamma.astype(jnp.float32) * inv_std
    wT = (w.astype(jnp.float32) * scale[:, None]).astype(jnp.bfloat16)
    b = (bn_beta.astype(jnp.float32)
         - bn_mean.astype(jnp.float32) * scale).reshape(Co, 1)

    # --- tile M (lane axis); ragged final block handled by Pallas -----------
    tm = _choose_tm(M, Kp, Co, out_dtype.itemsize, tm)
    grid = (pl.cdiv(M, tm),)

    buf_bytes = 2 * tm * (2 * Kp + out_dtype.itemsize * Co) \
        + 2 * (2 * Kp * Co + 4 * Co)
    vmem_limit = int(min(max(buf_bytes + (8 << 20), 32 << 20), 60 << 20))

    cost = pl.CostEstimate(
        flops=2 * M * Kp * Co,
        transcendentals=M * Co,
        bytes_accessed=int(2 * Kp * M + 2 * Kp * Co + 4 * Co
                           + out_dtype.itemsize * Co * M),
    )

    outT = pl.pallas_call(
        _spdconv_kernel,
        out_shape=jax.ShapeDtypeStruct((Co, M), out_dtype),
        grid_spec=pltpu.PrefetchScalarGridSpec(
            num_scalar_prefetch=0,
            grid=grid,
            in_specs=[
                pl.BlockSpec((Kp, tm), lambda i: (0, i)),
                pl.BlockSpec((Co, Kp), lambda i: (0, 0)),    # resident weight
                pl.BlockSpec((Co, 1), lambda i: (0, 0)),     # resident bias
            ],
            out_specs=pl.BlockSpec((Co, tm), lambda i: (0, i)),
        ),
        compiler_params=pltpu.CompilerParams(
            dimension_semantics=("parallel",),
            vmem_limit_bytes=vmem_limit,
        ),
        cost_estimate=cost,
    )(zT, wT, b)

    y = outT.reshape(Co, N, Ho, Wo)
    if channel_major_out:
        return y                       # kernel-native layout, no extra HBM pass
    return y.transpose(1, 0, 2, 3)     # NCHW for module parity (one HBM copy)


def reference_forward(x, conv_weight, bn_gamma, bn_beta, bn_mean, bn_var,
                      eps=1e-3):
    """Pure-JAX f32 reference matching the PyTorch semantics (self-check)."""
    z = jnp.concatenate(
        [x[..., ::2, ::2], x[..., 1::2, ::2], x[..., ::2, 1::2], x[..., 1::2, 1::2]],
        axis=1,
    )
    y = jnp.einsum("nchw,oc->nohw", z, conv_weight)
    inv_std = 1.0 / jnp.sqrt(bn_var + eps)
    y = (y - bn_mean[None, :, None, None]) * (bn_gamma * inv_std)[None, :, None, None] \
        + bn_beta[None, :, None, None]
    return y * jax.nn.sigmoid(y)


def _run_case(key, N, C_in, c, H, W):
    k_x, k_w, k_g, k_b, k_m, k_v = jax.random.split(key, 6)
    x = jax.random.normal(k_x, (N, C_in, H, W), dtype=jnp.float32)
    conv_weight = jax.random.normal(k_w, (c, 4 * C_in), dtype=jnp.float32) * 0.1
    bn_gamma = 1.0 + 0.1 * jax.random.normal(k_g, (c,), dtype=jnp.float32)
    bn_beta = 0.1 * jax.random.normal(k_b, (c,), dtype=jnp.float32)
    bn_mean = 0.05 * jax.random.normal(k_m, (c,), dtype=jnp.float32)
    bn_var = 1.0 + 0.1 * jax.nn.softplus(
        jax.random.normal(k_v, (c,), dtype=jnp.float32))

    y = spdconv_forward(x, conv_weight, bn_gamma, bn_beta, bn_mean, bn_var)
    y = jax.block_until_ready(y)
    y_ref = reference_forward(x, conv_weight, bn_gamma, bn_beta, bn_mean, bn_var)
    assert y.shape == (N, c, H // 2, W // 2), y.shape
    # bf16 activations/weights in the kernel vs. f32 reference -> relaxed tol.
    err = float(jnp.max(jnp.abs(y - y_ref)))
    assert jnp.allclose(y, y_ref, atol=2e-2, rtol=2e-2), err


if __name__ == "__main__":
    key = jax.random.PRNGKey(0)
    k1, k2 = jax.random.split(key)
    # Module: SPDConv(c=8) -> cv1 = Conv(2*c=16, c=8, 1, 1); input C_in = 4.
    _run_case(k1, N=2, C_in=4, c=8, H=16, W=16)
    # Ragged / padded paths: K=20 -> Kp=32 (channel zero-pad), M=162 -> two
    # tiles with a ragged final block (no explicit jnp.pad along M).
    _run_case(k2, N=2, C_in=5, c=10, H=18, W=18)
    print("KERNEL_OK")
</pallas_src>

<mosaic_0001>
module attributes {stable_mosaic.version = 11 : i64} {
  func.func @_spdconv_kernel(%arg0: i32, %arg1: memref<16x128xbf16, #tpu.memory_space<vmem>>, %arg2: memref<8x16xbf16, #tpu.memory_space<vmem>>, %arg3: memref<8x1xf32, #tpu.memory_space<vmem>>, %arg4: memref<8x128xf32, #tpu.memory_space<vmem>>) attributes {dimension_semantics = [#tpu.dimension_semantics<parallel>], iteration_bounds = array<i64: 1>, scalar_prefetch = 0 : i64, scratch_operands = 0 : i64, tpu.core_type = #tpu.core_type<tc>, window_params = [{transform_indices = @transform_0, window_bounds = array<i64: 16, 128>}, {pipeline_mode = #tpu.pipeline_mode<synchronous>, transform_indices = @transform_1, window_bounds = array<i64: 8, 16>}, {pipeline_mode = #tpu.pipeline_mode<synchronous>, transform_indices = @transform_2, window_bounds = array<i64: 8, 1>}, {transform_indices = @transform_3, window_bounds = array<i64: 8, 128>}]} {
    %c0 = arith.constant 0 : index
    %c0_0 = arith.constant 0 : index
    %0 = vector.load %arg2[%c0, %c0_0] : memref<8x16xbf16, #tpu.memory_space<vmem>>, vector<8x16xbf16>
    %c0_1 = arith.constant 0 : index
    %c0_2 = arith.constant 0 : index
    %1 = vector.load %arg1[%c0_1, %c0_2] : memref<16x128xbf16, #tpu.memory_space<vmem>>, vector<16x128xbf16>
    %cst = arith.constant dense<0.000000e+00> : vector<8x128xf32>
    %2 = tpu.matmul %0, %1, %cst {dimension_numbers = #tpu.dot_dimension_numbers<[1], [0], [0], [1], [0, 0, 1, 1], [], []>} : vector<8x16xbf16>, vector<16x128xbf16>, vector<8x128xf32> -> vector<8x128xf32>
    %c0_3 = arith.constant 0 : index
    %c0_4 = arith.constant 0 : index
    %3 = vector.load %arg3[%c0_3, %c0_4] : memref<8x1xf32, #tpu.memory_space<vmem>>, vector<8x1xf32>
    %4 = vector.broadcast %3 : vector<8x1xf32> to vector<8x128xf32>
    %5 = arith.addf %2, %4 : vector<8x128xf32>
    %6 = arith.negf %5 : vector<8x128xf32>
    %7 = math.exp %6 : vector<8x128xf32>
    %cst_5 = arith.constant 1.000000e+00 : f32
    %8 = vector.broadcast %cst_5 : f32 to vector<8x128xf32>
    %9 = arith.addf %8, %7 : vector<8x128xf32>
    %10 = arith.divf %8, %9 : vector<8x128xf32>
    %11 = arith.mulf %5, %10 : vector<8x128xf32>
    %c0_6 = arith.constant 0 : index
    %c0_7 = arith.constant 0 : index
    %12 = vector.load %arg4[%c0_6, %c0_7] : memref<8x128xf32, #tpu.memory_space<vmem>>, vector<8x128xf32>
    tpu.vector_store %arg4[%c0_6, %c0_7], %11 {strides = array<i32>} : memref<8x128xf32, #tpu.memory_space<vmem>>, vector<8x128xf32>,
    return
  }
  func.func @transform_0(%arg0: i32) -> (i32, i32) {
    %c0_i32 = arith.constant 0 : i32
    %c0_i32_0 = arith.constant 0 : i32
    return %c0_i32, %arg0 : i32, i32
  }
  func.func @transform_1(%arg0: i32) -> (i32, i32) {
    %c0_i32 = arith.constant 0 : i32
    %c0_i32_0 = arith.constant 0 : i32
    %c0_i32_1 = arith.constant 0 : i32
    return %c0_i32, %c0_i32_0 : i32, i32
  }
  func.func @transform_2(%arg0: i32) -> (i32, i32) {
    %c0_i32 = arith.constant 0 : i32
    %c0_i32_0 = arith.constant 0 : i32
    %c0_i32_1 = arith.constant 0 : i32
    return %c0_i32, %c0_i32_0 : i32, i32
  }
  func.func @transform_3(%arg0: i32) -> (i32, i32) {
    %c0_i32 = arith.constant 0 : i32
    %c0_i32_0 = arith.constant 0 : i32
    return %c0_i32, %arg0 : i32, i32
  }
}

</mosaic_0001>

<llo_original>
// kernel: tpu_custom_call.1
$region0: #{tpu_custom_call.1}
  #allocation0 [shape = 'u32[]', space=smem, size = 0x4, offset = 0x4, fixed_abs, tag = 'smem constant byte address 0x4 - core index']
  #allocation1 [shape = 'u32[72,128]{1,0:T(1,128)}', space=vmem, size = 0x9000, scoped, tag = 'internal scratch']
  %s0 = inlined_call_operand.vmem [shape: bf16[16,128], index: 0, kind: input, shape index: {}]
  %s1 = inlined_call_operand.hbm [shape: bf16[8,16], index: 1, kind: input, shape index: {}]
  %s2 = inlined_call_operand.vmem [shape: f32[8,1], index: 2, kind: input, shape index: {}]
  %s3 = inlined_call_operand.hbm [shape: f32[8,128], index: 3, kind: output, shape index: {}]
  %s4 = sld [smem:[#allocation0]]
  $region26: #{tpu_custom_call.1} parent=0
    _
  %s6 = ssub.s32 1, %s4
  %s7 = scalar_select 0, %s6, %s4
  $region1: #{tpu_custom_call.1} parent=0
    #allocation2 [shape = 'u8[2048]{0}', space=vmem, size = 0x800, scoped, tag = 'input window, operand 1, single buffered']
    #allocation3 [shape = 's32[1]{0}', space=sflag, size = 0x4, scoped, tag = 'scoped memory for tpu_custom_call.1']
    #allocation4 [shape = 's32[1]{0}', space=sflag, size = 0x4, scoped, tag = 'scoped memory for tpu_custom_call.1']
    #allocation5 [shape = 'u8[4096]{0}', space=vmem, size = 0x1000, scoped, tag = 'output window, operand 0, single buffered']
    %8 = vsyncpa [#allocation3], 0
    %9 = vsyncpa [#allocation4], 0
    // Predicated region
    $region2: #{tpu_custom_call.1} parent=1 // pred_check
      _
    $region3: #{tpu_custom_call.1} parent=1 // pred_check_branch
      %11 = sbr.rel (0) target = $region5
    $region4: #{tpu_custom_call.1} parent=1 // pred_region
      _
    $region5: #{tpu_custom_call.1} parent=1 // pred_fallthru
      _
    // Predicated region
    $region6: #{tpu_custom_call.1} parent=1 // pred_check
      _
    $region7: #{tpu_custom_call.1} parent=1 // pred_check_branch
      %13 = sbr.rel (0) target = $region9
    $region8: #{tpu_custom_call.1} parent=1 // pred_region
      %15 = vsyncadd [#allocation3], 0
      %s17 = sshll.u32 %s1, 4
      %s18 = int_to_ptr.hbm [resolvable:$true] %s17
      %s19 = sshll.u32 [#allocation2], 4
      %s20 = int_to_ptr.vmem [resolvable:$true] %s19
      %22 = dma.hbm_to_vmem [thread:$0]  %s18, 64, %s20, [#allocation3]
    $region9: #{tpu_custom_call.1} parent=1 // pred_fallthru
      _
    // Predicated region
    $region10: #{tpu_custom_call.1} parent=1 // pred_check
      _
    $region11: #{tpu_custom_call.1} parent=1 // pred_check_branch
      %24 = sbr.rel (0) target = $region13
    $region12: #{tpu_custom_call.1} parent=1 // pred_region
      _
    $region13: #{tpu_custom_call.1} parent=1 // pred_fallthru
      _
    // Predicated region
    $region14: #{tpu_custom_call.1} parent=1 // pred_check
      _
    $region15: #{tpu_custom_call.1} parent=1 // pred_check_branch
      %26 = sbr.rel (0) target = $region17
    $region16: #{tpu_custom_call.1} parent=1 // pred_region
      %28 = dma.done [#allocation3], 64
    $region17: #{tpu_custom_call.1} parent=1 // pred_fallthru
      _
    %v30 = vld [vmem:[#allocation2] sm:$0xf]
    %v31 = vld [vmem:[%s0] sm:$0xf]
    %v32 = vld [vmem:[%s0 + $0x4] sm:$0xf]
    %v33 = vld [vmem:[%s2] sm:$0xff]
    %35 = vset.pattern.permute.xlu0 0
    %36 = vperm.xlu0 %35, %v33
    %v37 = vpop.permute.xlu0 %36
    %v41 = vunpack.c.l.b16 %v31
    %v42 = vunpack.c.l.b16 %v32
    %v43 = vpack.c.b16 %v42, %v41
    %vm45 = vcmask 130048
    %v47 = vsel %vm45, %v30, 0
    %49 = vmatpush.bf16.msra.mxu0 0
    %50 = vmatpush.bf16.msra.mxu0 0
    %51 = vmatpush.bf16.msra.mxu0 0
    %52 = vmatpush.bf16.msra.mxu0 0
    %53 = vmatpush.bf16.msra.mxu0 0
    %54 = vmatpush.bf16.msra.mxu0 0
    %55 = vmatpush.bf16.msra.mxu0 0
    %56 = vmatpush.bf16.msra.mxu0 %v43
    %57 = vmatmul.bf16.gmra.mxu0 %v47
    %v58 = vpop.f32.mrf.mxu0
    %v59 = vadd.f32 %v37, %v58
    %v60 = vpop.f32.mrf.mxu0
    %61 = vdwg.mxu0
    %v62 = vxor.u32 %v59, 2147483648
    %v63 = vmul.f32 %v62, 1.442695
    %v64 = vpow.pop %v63
    %v65 = vadd.f32 %v64, 1.0
    %v66 = vrcp.pop %v65
    %v67 = vmul.f32 %v65, %v66
    %v68 = vsub.f32 1.0, %v67
    %v69 = vmul.f32 %v66, %v68
    %v70 = vadd.f32 %v66, %v69
    %vm71 = vweird.f32 %v65
    %vm72 = vweird.f32 %v66
    %vm73 = vmor %vm71, %vm72
    %v74 = vsel %vm73, %v66, %v70
    %v75 = vand.u32 2147483647, %v65
    %vm76 = vcmp.eq.f32.partialorder %v75, 8.507059e+37
    %v77 = vand.u32 %v65, 2147483648
    %v78 = vor.u32 1.1754944e-38, %v77
    %v79 = vsel %vm76, %v78, %v74
    %v80 = vmul.f32 1.0, %v79
    %v81 = vmul.f32 %v59, %v80
    %82 = vst [vmem:[#allocation5] sm:$0xff] %v81
    // Predicated region
    $region18: #{tpu_custom_call.1} parent=1 // pred_check
      _
    $region19: #{tpu_custom_call.1} parent=1 // pred_check_branch
      %84 = sbr.rel (0) target = $region21
    $region20: #{tpu_custom_call.1} parent=1 // pred_region
      %86 = vsyncadd [#allocation4], 0
      %s88 = sshll.u32 [#allocation5], 4
      %s89 = int_to_ptr.vmem [resolvable:$true] %s88
      %s90 = sshll.u32 %s3, 4
      %s91 = int_to_ptr.hbm [resolvable:$true] %s90
      %93 = dma.vmem_to_hbm [thread:$0]  %s89, 128, %s91, [#allocation4]
    $region21: #{tpu_custom_call.1} parent=1 // pred_fallthru
      _
    // Predicated region
    $region22: #{tpu_custom_call.1} parent=1 // pred_check
      _
    $region23: #{tpu_custom_call.1} parent=1 // pred_check_branch
      %95 = sbr.rel (0) target = $region25
    $region24: #{tpu_custom_call.1} parent=1 // pred_region
      %97 = dma.done [#allocation4], 128
    $region25: #{tpu_custom_call.1} parent=1 // pred_fallthru
      _
    %98 = vsyncpa [#allocation3], 1
    %99 = vsyncpa [#allocation4], 1

</llo_original>
